<compile_context>
chip_gen: v7x
topology: tpu7x:2x2x1
jax: 0.10.0
libtpu: 0.0.40
codegen_flags: <defaults>
</compile_context>

<pallas_src>
import functools

import jax
import jax.numpy as jnp
from jax.experimental import pallas as pl
from jax.experimental.pallas import tpu as pltpu

_LANES = 128
_TILE_ROWS = 4096                       # (4096,128) f32 block = 2 MiB
_VMEM_LIMIT = 32 * 1024 * 1024          # safe on v5e/v6e (128 MiB) and v7x (64 MiB)
_FUSE_LIMIT_ELEMS = 1 << 20             # <= 4 MiB of f32 -> fused single-call path


# --------------------- fused path: abs-sum + ternarize ----------------------- #
def _fused_kernel(scale_ref, x_ref, o_ref, delta_ref):
    # scale_ref: scalar-prefetched (1,) f32 in SMEM holding delta / numel(x).
    x = x_ref[...]
    d = jnp.sum(jnp.abs(x)) * scale_ref[0]          # scalar delta_eff
    delta_ref[...] = jnp.zeros((1, 1), jnp.float32) + d
    o_ref[...] = (x >= d).astype(jnp.float32) - (x <= -d).astype(jnp.float32)


def _fused_pallas(x_slab, scale_vec):
    rows = x_slab.shape[0]
    out_slab, d_eff = pl.pallas_call(
        _fused_kernel,
        out_shape=(jax.ShapeDtypeStruct(x_slab.shape, jnp.float32),
                   jax.ShapeDtypeStruct((1, 1), jnp.float32)),
        grid_spec=pltpu.PrefetchScalarGridSpec(
            num_scalar_prefetch=1,
            grid=(1,),
            in_specs=[pl.BlockSpec((rows, _LANES), lambda i, s: (0, 0))],
            out_specs=[pl.BlockSpec((rows, _LANES), lambda i, s: (0, 0)),
                       pl.BlockSpec((1, 1), lambda i, s: (0, 0))],
        ),
        compiler_params=pltpu.CompilerParams(
            dimension_semantics=("arbitrary",),
            vmem_limit_bytes=_VMEM_LIMIT),
    )(scale_vec, x_slab)
    return out_slab, d_eff


# ----------------------- grid path kernel 1: |x| sum ------------------------- #
def _make_abs_sum_kernel(total_rows, tile_rows, need_mask):
    def kernel(x_ref, out_ref, acc_ref):
        i = pl.program_id(0)

        @pl.when(i == 0)
        def _init():
            acc_ref[...] = jnp.zeros_like(acc_ref)

        x = jnp.abs(x_ref[...])
        if need_mask:
            # Tail block: rows beyond the array are OOB (unspecified reads);
            # zero them so they don't poison the sum.
            row = jax.lax.broadcasted_iota(jnp.int32, x.shape, 0) + i * tile_rows
            x = jnp.where(row < total_rows, x, 0.0)
        # VPU-only partial reduction into a lane-wide vector accumulator.
        acc_ref[...] += jnp.sum(x, axis=0, keepdims=True)

        @pl.when(i == pl.num_programs(0) - 1)
        def _finalize():
            out_ref[...] = jnp.sum(acc_ref[...], axis=1, keepdims=True)

    return kernel


def _abs_sum_pallas(x_slab):
    rows = x_slab.shape[0]
    tile_rows = min(_TILE_ROWS, rows)
    grid = (pl.cdiv(rows, tile_rows),)
    need_mask = (rows % tile_rows) != 0
    kernel = _make_abs_sum_kernel(rows, tile_rows, need_mask)
    out = pl.pallas_call(
        kernel,
        out_shape=jax.ShapeDtypeStruct((1, 1), jnp.float32),
        grid_spec=pltpu.PrefetchScalarGridSpec(
            num_scalar_prefetch=0,
            grid=grid,
            in_specs=[pl.BlockSpec((tile_rows, _LANES), lambda i: (i, 0))],
            out_specs=pl.BlockSpec((1, 1), lambda i: (0, 0)),
            scratch_shapes=[pltpu.VMEM((1, _LANES), jnp.float32)],
        ),
        compiler_params=pltpu.CompilerParams(
            dimension_semantics=("arbitrary",),
            vmem_limit_bytes=_VMEM_LIMIT),
    )(x_slab)
    return out[0, 0]


# ----------------------- grid path kernel 2: ternarize ----------------------- #
def _ternarize_kernel(delta_ref, x_ref, o_ref):
    # delta_ref: scalar-prefetched (1,) f32 in SMEM.
    d = delta_ref[0]
    x = x_ref[...]
    # OOB rows of the tail block read unspecified data, but their writes are
    # dropped on writeback, so no masking is needed here.
    o_ref[...] = (x >= d).astype(jnp.float32) - (x <= -d).astype(jnp.float32)


def _ternarize_pallas(x_slab, delta):
    rows = x_slab.shape[0]
    tile_rows = min(_TILE_ROWS, rows)
    grid = (pl.cdiv(rows, tile_rows),)
    delta_vec = jnp.reshape(jnp.asarray(delta, jnp.float32), (1,))
    return pl.pallas_call(
        _ternarize_kernel,
        out_shape=jax.ShapeDtypeStruct(x_slab.shape, jnp.float32),
        grid_spec=pltpu.PrefetchScalarGridSpec(
            num_scalar_prefetch=1,
            grid=grid,
            in_specs=[pl.BlockSpec((tile_rows, _LANES), lambda i, d: (i, 0))],
            out_specs=pl.BlockSpec((tile_rows, _LANES), lambda i, d: (i, 0)),
        ),
        compiler_params=pltpu.CompilerParams(
            dimension_semantics=("parallel",),
            vmem_limit_bytes=_VMEM_LIMIT),
    )(delta_vec, x_slab)


# ------------------------------- host wrapper -------------------------------- #
def _to_slab(x_flat):
    """Reshape a flat f32 vector to a lane-dense (rows, 128) slab.

    Only pads up to a multiple of 128 elements (<=127 zeros); a no-op reshape
    when numel is already a multiple of 128."""
    n = x_flat.shape[0]
    rows = -(-n // _LANES)
    n_pad = rows * _LANES
    if n_pad != n:
        x_flat = jnp.pad(x_flat, (0, n_pad - n))
    return x_flat.reshape(rows, _LANES)


@functools.partial(jax.jit, static_argnames=("delta", "momentum", "training"))
def ternary_forward(x, running_delta, *, delta=0.5, momentum=0.01, training=True):
    """Returns (ternarized x [same shape, f32], updated running_delta [shape (1,)])."""
    orig_shape = x.shape
    x_flat = x.astype(jnp.float32).reshape(-1)
    n = x_flat.shape[0]
    x_slab = _to_slab(x_flat)

    if momentum > 0 and training:
        if n <= _FUSE_LIMIT_ELEMS:
            # Fused single-pass kernel: one read of x, delta computed in-kernel.
            scale_vec = jnp.full((1,), delta / n, jnp.float32)
            out_slab, d_eff = _fused_pallas(x_slab, scale_vec)
            delta_eff = d_eff[0, 0]
        else:
            abs_sum = _abs_sum_pallas(x_slab)            # ||x||_1 (pads are zero)
            delta_eff = abs_sum * (delta / n)
            out_slab = _ternarize_pallas(x_slab, delta_eff)
        new_running = momentum * delta_eff + (1.0 - momentum) * running_delta
    elif momentum > 0:
        delta_eff = running_delta[0]
        new_running = running_delta
        out_slab = _ternarize_pallas(x_slab, delta_eff)
    else:
        delta_eff = jnp.float32(delta)
        new_running = running_delta
        out_slab = _ternarize_pallas(x_slab, delta_eff)

    out_flat = out_slab.reshape(-1)
    if out_flat.shape[0] != n:
        out_flat = out_flat[:n]
    out = out_flat.reshape(orig_shape)
    return out, new_running


class Ternary:
    """JAX/Pallas port of the PyTorch Ternary module (forward pass)."""

    def __init__(self):
        self.delta = 0.5
        self.momentum = 0.01
        self.track_running_stats = True
        self.order = 2
        self.training = True
        # reset_parameters: momentum > 0  ->  running_delta = delta * 0.7979
        self.running_delta = jnp.full((1,), self.delta * 0.7979, jnp.float32)

    def __call__(self, x):
        out, new_rd = ternary_forward(
            x,
            self.running_delta,
            delta=self.delta,
            momentum=self.momentum,
            training=self.training and self.track_running_stats,
        )
        self.running_delta = new_rd
        return out


# ------------------------------ reference check ------------------------------ #
def _ref_forward(x, running_delta, delta=0.5, momentum=0.01, training=True):
    x = x.astype(jnp.float32)
    if momentum > 0 and training:
        d = jnp.sum(jnp.abs(x)) * (delta / x.size)
        new_rd = momentum * d + (1.0 - momentum) * running_delta
    elif momentum > 0:
        d = running_delta[0]
        new_rd = running_delta
    else:
        d = jnp.float32(delta)
        new_rd = running_delta
    out = (x >= d).astype(jnp.float32) - (x <= -d).astype(jnp.float32)
    return out, new_rd


if __name__ == "__main__":
    key = jax.random.PRNGKey(0)
    x = jax.random.normal(key, (2, 4, 16, 16), dtype=jnp.float32)  # NCHW

    mod = Ternary()
    out = mod(x)
    out = jax.block_until_ready(out)
    rd = jax.block_until_ready(mod.running_delta)

    ref_out, ref_rd = _ref_forward(x, jnp.full((1,), 0.5 * 0.7979, jnp.float32))
    assert out.shape == x.shape and out.dtype == jnp.float32
    assert jnp.allclose(out, ref_out), "ternary output mismatch"
    assert jnp.allclose(rd, ref_rd, rtol=1e-5, atol=1e-6), "running_delta mismatch"

    # Exercise the grid (large-tensor) path once, with a ragged tail, for coverage.
    x_big = jax.random.normal(jax.random.PRNGKey(1), (2 * _FUSE_LIMIT_ELEMS + 300,),
                              dtype=jnp.float32)
    out_big, rd_big = ternary_forward(x_big, jnp.full((1,), 0.5 * 0.7979, jnp.float32))
    out_big = jax.block_until_ready(out_big)
    ref_big, ref_rd_big = _ref_forward(x_big, jnp.full((1,), 0.5 * 0.7979, jnp.float32))
    assert jnp.allclose(out_big, ref_big), "large-path ternary output mismatch"
    assert jnp.allclose(rd_big, ref_rd_big, rtol=1e-5, atol=1e-6), "large-path running_delta mismatch"

    # Exercise the eval path (uses running_delta as threshold).
    mod_eval = Ternary()
    mod_eval.training = False
    out_eval = jax.block_until_ready(mod_eval(x))
    ref_eval, _ = _ref_forward(x, jnp.full((1,), 0.5 * 0.7979, jnp.float32),
                               training=False)
    assert jnp.allclose(out_eval, ref_eval), "eval-path ternary output mismatch"

    print("KERNEL_OK")
</pallas_src>

<mosaic_0001>
module attributes {stable_mosaic.version = 11 : i64} {
  func.func @_fused_kernel(%arg0: i32, %arg1: memref<1xf32, #tpu.memory_space<smem>>, %arg2: memref<16x128xf32, #tpu.memory_space<vmem>>, %arg3: memref<16x128xf32, #tpu.memory_space<vmem>>, %arg4: memref<1x1xf32, #tpu.memory_space<vmem>>) attributes {dimension_semantics = [#tpu.dimension_semantics<arbitrary>], iteration_bounds = array<i64: 1>, scalar_prefetch = 1 : i64, scratch_operands = 0 : i64, tpu.core_type = #tpu.core_type<tc>, window_params = [{pipeline_mode = #tpu.pipeline_mode<synchronous>, transform_indices = @transform_0, window_bounds = array<i64: 16, 128>}, {pipeline_mode = #tpu.pipeline_mode<synchronous>, transform_indices = @transform_1, window_bounds = array<i64: 16, 128>}, {pipeline_mode = #tpu.pipeline_mode<synchronous>, transform_indices = @transform_2, window_bounds = array<i64: 1, 1>}]} {
    %c0 = arith.constant 0 : index
    %c0_0 = arith.constant 0 : index
    %0 = vector.load %arg2[%c0, %c0_0] : memref<16x128xf32, #tpu.memory_space<vmem>>, vector<16x128xf32>
    %1 = math.absf %0 : vector<16x128xf32>
    %2 = vector.shape_cast %1 : vector<16x128xf32> to vector<1x16x128xf32>
    %cst = arith.constant dense<0.000000e+00> : vector<1xf32>
    %3 = vector.multi_reduction <add>, %2, %cst [1, 2] : vector<1x16x128xf32> to vector<1xf32>
    %4 = vector.shape_cast %3 : vector<1xf32> to vector<1x1x1xf32>
    %5 = vector.extract %4[0, 0, 0] : f32 from vector<1x1x1xf32>
    %c0_1 = arith.constant 0 : index
    %6 = memref.load %arg1[%c0_1] : memref<1xf32, #tpu.memory_space<smem>>
    %7 = arith.mulf %5, %6 : f32
    %cst_2 = arith.constant 0.000000e+00 : f32
    %8 = vector.broadcast %cst_2 : f32 to vector<1x1xf32>
    %9 = vector.broadcast %7 : f32 to vector<1x1xf32>
    %10 = arith.addf %8, %9 : vector<1x1xf32>
    %c0_3 = arith.constant 0 : index
    %c0_4 = arith.constant 0 : index
    %11 = vector.load %arg4[%c0_3, %c0_4] : memref<1x1xf32, #tpu.memory_space<vmem>>, vector<1x1xf32>
    tpu.vector_store %arg4[%c0_3, %c0_4], %10 {strides = array<i32>} : memref<1x1xf32, #tpu.memory_space<vmem>>, vector<1x1xf32>,
    %12 = vector.broadcast %7 : f32 to vector<16x128xf32>
    %13 = arith.cmpf oge, %0, %12 : vector<16x128xf32>
    %14 = arith.extui %13 : vector<16x128xi1> to vector<16x128xi32>
    %15 = arith.sitofp %14 : vector<16x128xi32> to vector<16x128xf32>
    %cst_5 = arith.constant 0.000000e+00 : f32
    %16 = arith.subf %cst_5, %7 : f32
    %17 = vector.broadcast %16 : f32 to vector<16x128xf32>
    %18 = arith.cmpf ole, %0, %17 : vector<16x128xf32>
    %19 = arith.extui %18 : vector<16x128xi1> to vector<16x128xi32>
    %20 = arith.sitofp %19 : vector<16x128xi32> to vector<16x128xf32>
    %21 = arith.subf %15, %20 : vector<16x128xf32>
    %c0_6 = arith.constant 0 : index
    %c0_7 = arith.constant 0 : index
    %22 = vector.load %arg3[%c0_6, %c0_7] : memref<16x128xf32, #tpu.memory_space<vmem>>, vector<16x128xf32>
    tpu.vector_store %arg3[%c0_6, %c0_7], %21 {strides = array<i32>} : memref<16x128xf32, #tpu.memory_space<vmem>>, vector<16x128xf32>,
    return
  }
  func.func @transform_0(%arg0: i32, %arg1: memref<1xf32, #tpu.memory_space<smem>>) -> (i32, i32) {
    %c0_i32 = arith.constant 0 : i32
    %c0_i32_0 = arith.constant 0 : i32
    %c0_i32_1 = arith.constant 0 : i32
    return %c0_i32, %c0_i32_0 : i32, i32
  }
  func.func @transform_1(%arg0: i32, %arg1: memref<1xf32, #tpu.memory_space<smem>>) -> (i32, i32) {
    %c0_i32 = arith.constant 0 : i32
    %c0_i32_0 = arith.constant 0 : i32
    %c0_i32_1 = arith.constant 0 : i32
    return %c0_i32, %c0_i32_0 : i32, i32
  }
  func.func @transform_2(%arg0: i32, %arg1: memref<1xf32, #tpu.memory_space<smem>>) -> (i32, i32) {
    %c0_i32 = arith.constant 0 : i32
    %c0_i32_0 = arith.constant 0 : i32
    %c0_i32_1 = arith.constant 0 : i32
    return %c0_i32, %c0_i32_0 : i32, i32
  }
}

</mosaic_0001>

<llo_original>
// kernel: ternary_forward.1
$region0: #{ternary_forward.1}
  #allocation0 [shape = 'u32[]', space=smem, size = 0x4, offset = 0x4, fixed_abs, tag = 'smem constant byte address 0x4 - core index']
  #allocation1 [shape = 'u32[144,128]{1,0:T(1,128)}', space=vmem, size = 0x12000, scoped, tag = 'internal scratch']
  #allocation2 [shape = 's32[1]{0}', space=sflag, size = 0x4, scoped, tag = 'scoped memory for ternary_forward.1']
  #allocation3 [shape = 'f32[1]{0:T(128)S(6)}', space=smem, size = 0x200, scoped, tag = 'prefetched SMEM operand 0']
  %s0 = inlined_call_operand.<no memory space> [shape: f32[1], index: 0, kind: input, shape index: {}]
  %s1 = inlined_call_operand.vmem [shape: f32[16,128], index: 1, kind: input, shape index: {}]
  %s2 = inlined_call_operand.vmem [shape: f32[16,128], index: 2, kind: output, shape index: {0}]
  %s3 = inlined_call_operand.hbm [shape: f32[1,1], index: 3, kind: output, shape index: {1}]
  %4 = xla_tuple %s2, %s3
  %s5 = sld [smem:[#allocation0]]
  $region22: #{ternary_forward.1} parent=0
    _
  %s7 = ssub.s32 1, %s5
  %s8 = scalar_select 0, %s7, %s5
  %9 = sst [smem:[#allocation3]] %s0
  $region1: #{ternary_forward.1} parent=0
    #allocation4 [shape = 'u8[512]{0}', space=vmem, size = 0x400, scoped, tag = 'output window, operand 1, single buffered']
    #allocation5 [shape = 's32[1]{0}', space=sflag, size = 0x4, scoped, tag = 'scoped memory for ternary_forward.1']
    %10 = vsyncpa [#allocation5], 0
    // Predicated region
    $region2: #{ternary_forward.1} parent=1 // pred_check
      _
    $region3: #{ternary_forward.1} parent=1 // pred_check_branch
      %12 = sbr.rel (0) target = $region5
    $region4: #{ternary_forward.1} parent=1 // pred_region
      _
    $region5: #{ternary_forward.1} parent=1 // pred_fallthru
      _
    %v13 = vld [vmem:[%s1] sm:$0xff]
    %v14 = vld [vmem:[%s1 + $0x8] sm:$0xff]
    %v15 = vand.u32 2147483647, %v13
    %v16 = vand.u32 2147483647, %v14
    %v17 = vadd.f32 %v15, %v16
    %18 = vadd.xlane.f32.xlu0 %v17
    %v19 = vpop.xlane.xlu0 %18
    %v20 = vrot.slane %v19, 4
    %v21 = vadd.f32 %v19, %v20
    %v22 = vrot.slane %v21, 2
    %v23 = vadd.f32 %v21, %v22
    %v24 = vrot.slane %v23, 1
    %v25 = vadd.f32 %v23, %v24
    %s26 = vtos %v25
    %s27 = sld [smem:[#allocation3]]
    %s28 = smul.f32 %s26, %s27
    %v29 = vstv %s28
    %v30 = vadd.f32 %v29, 0.0
    %vm31 = vcmask 0
    %32 = vst.msk [vmem:[#allocation4] sm:$0x1] %vm31, %v30
    %vm33 = vcmp.ge.f32.partialorder %v13, %v29
    %vm34 = vcmp.ge.f32.partialorder %v14, %v29
    %v35 = vsel %vm33, 1, 0
    %v36 = vsel %vm34, 1, 0
    %v37 = vcvt.s32.f32 %v35
    %v38 = vcvt.s32.f32 %v36
    %s39 = ssub.f32 0.0, %s28
    %v40 = vstv %s39
    %vm41 = vcmp.le.f32.partialorder %v13, %v40
    %vm42 = vcmp.le.f32.partialorder %v14, %v40
    %v43 = vsel %vm41, 1, 0
    %v44 = vsel %vm42, 1, 0
    %v45 = vcvt.s32.f32 %v43
    %v46 = vcvt.s32.f32 %v44
    %v47 = vsub.f32 %v37, %v45
    %v48 = vsub.f32 %v38, %v46
    %49 = vst [vmem:[%s2] sm:$0xff] %v47
    %50 = vst [vmem:[%s2 + $0x8] sm:$0xff] %v48
    // Predicated region
    $region6: #{ternary_forward.1} parent=1 // pred_check
      _
    $region7: #{ternary_forward.1} parent=1 // pred_check_branch
      %52 = sbr.rel (0) target = $region9
    $region8: #{ternary_forward.1} parent=1 // pred_region
      _
    $region9: #{ternary_forward.1} parent=1 // pred_fallthru
      _
    // Predicated region
    $region10: #{ternary_forward.1} parent=1 // pred_check
      _
    $region11: #{ternary_forward.1} parent=1 // pred_check_branch
      %54 = sbr.rel (0) target = $region13
    $region12: #{ternary_forward.1} parent=1 // pred_region
      %s56 = ssub.s32 16, 16
      %57 = vsyncadd [#allocation5], %s56
      %s59 = sshll.u32 [#allocation4], 4
      %s60 = int_to_ptr.vmem [resolvable:$true] %s59
      %62 = dma.vmem_to_hbm [thread:$0]  %s60, 16, %s3, [#allocation5]
    $region13: #{ternary_forward.1} parent=1 // pred_fallthru
      _
    // Predicated region
    $region14: #{ternary_forward.1} parent=1 // pred_check
      _
    $region15: #{ternary_forward.1} parent=1 // pred_check_branch
      %64 = sbr.rel (0) target = $region17
    $region16: #{ternary_forward.1} parent=1 // pred_region
      _
    $region17: #{ternary_forward.1} parent=1 // pred_fallthru
      _
    // Predicated region
    $region18: #{ternary_forward.1} parent=1 // pred_check
      _
    $region19: #{ternary_forward.1} parent=1 // pred_check_branch
      %66 = sbr.rel (0) target = $region21
    $region20: #{ternary_forward.1} parent=1 // pred_region
      %67 = dma.done [#allocation5], 16
    $region21: #{ternary_forward.1} parent=1 // pred_fallthru
      _
    %68 = vsyncpa [#allocation5], 1

</llo_original>
